<compile_context>
chip_gen: v7x
topology: tpu7x:2x2x1
jax: 0.10.0
libtpu: 0.0.40
codegen_flags: <defaults>
</compile_context>

<pallas_src>
import jax
import jax.numpy as jnp
from jax.experimental import pallas as pl
from jax.experimental.pallas import tpu as pltpu


LANE = 128  # TPU lane width; the label dim is padded up to a multiple of this.


def cmodel_kernel(x_ref, w1_ref, b1_ref, w2_ref, b2_ref, lab_ref,
                  logp_ref, part_ref):
    # x:    (TB, H)  f32 VMEM      w1: (H, H)  f32 VMEM  (in, out)
    # b1:   (1, H)   f32 VMEM      w2: (H, LP) f32 VMEM  (in, out, lane-padded)
    # b2:   (1, LP)  f32 VMEM      lab: (TB, 1) int32 VMEM (-1 marks padding)
    # logp_ref: (TB, LP) f32       part_ref: (1, 1) f32 (per-tile -sum of picks)
    x = x_ref[...]

    # Linear(hidden -> hidden): MXU, f32 accumulate; bias is a sublane bcast.
    h = jnp.dot(x, w1_ref[...], preferred_element_type=jnp.float32) + b1_ref[...]

    # Linear(hidden -> label_num), lane-padded to LP.  Padded lanes are already
    # pre-biased to -1e30 via the b2 padding done in the wrapper, so no
    # in-kernel masking is needed (exp underflows to exactly 0 in f32).
    logits = jnp.dot(h, w2_ref[...], preferred_element_type=jnp.float32) + b2_ref[...]

    # Numerically stable LogSoftmax(dim=-1).
    m = jnp.max(logits, axis=-1, keepdims=True)
    z = logits - m
    lse = jnp.log(jnp.sum(jnp.exp(z), axis=-1, keepdims=True))
    logp = z - lse
    logp_ref[...] = logp.astype(logp_ref.dtype)       # full-lane, unmasked store

    # Vectorized NLLLoss pick: one lane-iota compare against the label column,
    # one select, one reduce.  Padding rows carry label -1 and never match.
    tb, lp = logp.shape
    lane = jax.lax.broadcasted_iota(jnp.int32, (tb, lp), 1)
    picked = jnp.where(lane == lab_ref[...], logp, 0.0)
    part_ref[...] = -jnp.sum(picked, keepdims=True)    # (1, 1) scalar tile


def cmodel_forward(x, w1, b1, w2, b2, labels, *, tile_b=None):
    """Forward pass of CModel: returns (mean NLL loss, log-probs (B, L))."""
    B, H = x.shape
    L = w2.shape[1]
    LP = LANE * pl.cdiv(L, LANE)           # lane-padded label dim (mult. of 128)

    # Batch tile: for small B, one sublane-aligned tile covering the whole
    # batch (grid=(1,)); for large B pass tile_b >= 128 (v5e) / 256 (v6e/v7x).
    if tile_b is None:
        tile_b = 8 * pl.cdiv(B, 8)
    G = pl.cdiv(B, tile_b)
    Bp = G * tile_b

    # Pad batch; padded rows get label -1 so they contribute nothing to loss.
    x_p = jnp.pad(x, ((0, Bp - B), (0, 0)))
    lab_p = jnp.pad(labels.astype(jnp.int32), (0, Bp - B),
                    constant_values=-1).reshape(Bp, 1)

    # Lane-pad the label dim of the second linear; padded b2 lanes carry the
    # -1e30 pre-bias (w2 padding stays 0) so no in-kernel logits mask is needed.
    w2_p = jnp.pad(w2, ((0, 0), (0, LP - L)))
    b2_p = jnp.pad(b2.reshape(1, L), ((0, 0), (0, LP - L)),
                   constant_values=jnp.float32(-1e30))
    b1_2d = b1.reshape(1, H)

    # TODO(synk): for much larger H, cast MXU inputs to bf16, K-tile the
    # resident weights (v7x VMEM budget is half of v6e's), and mark the
    # constant-index weight BlockSpecs pipeline_mode=pl.Buffered(1).
    logp_pad, partials = pl.pallas_call(
        cmodel_kernel,
        grid=(G,),
        in_specs=[
            pl.BlockSpec((tile_b, H), lambda i: (i, 0)),   # x tile
            pl.BlockSpec((H, H), lambda i: (0, 0)),        # w1 (resident)
            pl.BlockSpec((1, H), lambda i: (0, 0)),        # b1
            pl.BlockSpec((H, LP), lambda i: (0, 0)),       # w2 (lane-padded)
            pl.BlockSpec((1, LP), lambda i: (0, 0)),       # b2 (pre-biased pad)
            pl.BlockSpec((tile_b, 1), lambda i: (i, 0)),   # labels column
        ],
        out_specs=(
            pl.BlockSpec((tile_b, LP), lambda i: (i, 0)),  # log-prob slab
            pl.BlockSpec((1, 1), lambda i: (i, 0)),        # per-tile loss partial
        ),
        out_shape=(
            jax.ShapeDtypeStruct((Bp, LP), jnp.float32),
            jax.ShapeDtypeStruct((G, 1), jnp.float32),
        ),
        compiler_params=pltpu.CompilerParams(
            dimension_semantics=("parallel",) if G > 1 else ("arbitrary",)),
    )(x_p, w1, b1_2d, w2_p, b2_p, lab_p)

    loss = jnp.sum(partials) / jnp.float32(B)   # tiny (G-element) reduction
    logp = logp_pad[:B, :L]
    return loss, logp


if __name__ == "__main__":
    B, H, L = 32, 64, 4    # hidden=64, label_num=4 (module defaults)

    key = jax.random.PRNGKey(0)
    kx, kl, k1, k2, k3, k4 = jax.random.split(key, 6)

    # Deterministic parameter init (PyTorch Linear-style uniform bounds).
    bound = 1.0 / jnp.sqrt(H)
    w1 = jax.random.uniform(k1, (H, H), jnp.float32, -bound, bound)  # (in, out)
    b1 = jax.random.uniform(k2, (H,), jnp.float32, -bound, bound)
    w2 = jax.random.uniform(k3, (H, L), jnp.float32, -bound, bound)  # (in, out)
    b2 = jax.random.uniform(k4, (L,), jnp.float32, -bound, bound)

    x = jax.random.normal(kx, (B, H), jnp.float32)
    labels = jax.random.randint(kl, (B,), 0, L, jnp.int32)

    loss, logp = cmodel_forward(x, w1, b1, w2, b2, labels)
    jax.block_until_ready((loss, logp))

    # Pure-JAX reference (same forward semantics as the PyTorch module).
    h = x @ w1 + b1
    logits = h @ w2 + b2
    ref_logp = jax.nn.log_softmax(logits, axis=-1)
    ref_loss = -jnp.mean(ref_logp[jnp.arange(B), labels])

    assert jnp.allclose(logp, ref_logp, atol=1e-5), float(jnp.max(jnp.abs(logp - ref_logp)))
    assert jnp.allclose(loss, ref_loss, atol=1e-5), (float(loss), float(ref_loss))

    print("KERNEL_OK")
</pallas_src>

<mosaic_0001>
module attributes {stable_mosaic.version = 11 : i64} {
  func.func @cmodel_kernel(%arg0: i32, %arg1: memref<32x64xf32, #tpu.memory_space<vmem>>, %arg2: memref<64x64xf32, #tpu.memory_space<vmem>>, %arg3: memref<1x64xf32, #tpu.memory_space<vmem>>, %arg4: memref<64x128xf32, #tpu.memory_space<vmem>>, %arg5: memref<1x128xf32, #tpu.memory_space<vmem>>, %arg6: memref<32x1xi32, #tpu.memory_space<vmem>>, %arg7: memref<32x128xf32, #tpu.memory_space<vmem>>, %arg8: memref<1x1xf32, #tpu.memory_space<vmem>>) attributes {dimension_semantics = [#tpu.dimension_semantics<arbitrary>], iteration_bounds = array<i64: 1>, scalar_prefetch = 0 : i64, scratch_operands = 0 : i64, tpu.core_type = #tpu.core_type<tc>, window_params = [{transform_indices = @transform_0, window_bounds = array<i64: 32, 64>}, {pipeline_mode = #tpu.pipeline_mode<synchronous>, transform_indices = @transform_1, window_bounds = array<i64: 64, 64>}, {pipeline_mode = #tpu.pipeline_mode<synchronous>, transform_indices = @transform_2, window_bounds = array<i64: 1, 64>}, {pipeline_mode = #tpu.pipeline_mode<synchronous>, transform_indices = @transform_3, window_bounds = array<i64: 64, 128>}, {pipeline_mode = #tpu.pipeline_mode<synchronous>, transform_indices = @transform_4, window_bounds = array<i64: 1, 128>}, {transform_indices = @transform_5, window_bounds = array<i64: 32, 1>}, {transform_indices = @transform_6, window_bounds = array<i64: 32, 128>}, {transform_indices = @transform_7, window_bounds = array<i64: 1, 1>}]} {
    %c0 = arith.constant 0 : index
    %c0_0 = arith.constant 0 : index
    %0 = vector.load %arg1[%c0, %c0_0] : memref<32x64xf32, #tpu.memory_space<vmem>>, vector<32x64xf32>
    %c0_1 = arith.constant 0 : index
    %c0_2 = arith.constant 0 : index
    %1 = vector.load %arg2[%c0_1, %c0_2] : memref<64x64xf32, #tpu.memory_space<vmem>>, vector<64x64xf32>
    %cst = arith.constant dense<0.000000e+00> : vector<32x64xf32>
    %2 = tpu.matmul %0, %1, %cst {dimension_numbers = #tpu.dot_dimension_numbers<[1], [0], [0], [1], [0, 0, 1, 1], [], []>} : vector<32x64xf32>, vector<64x64xf32>, vector<32x64xf32> -> vector<32x64xf32>
    %c0_3 = arith.constant 0 : index
    %c0_4 = arith.constant 0 : index
    %3 = vector.load %arg3[%c0_3, %c0_4] : memref<1x64xf32, #tpu.memory_space<vmem>>, vector<1x64xf32>
    %4 = vector.broadcast %3 : vector<1x64xf32> to vector<32x64xf32>
    %5 = arith.addf %2, %4 : vector<32x64xf32>
    %c0_5 = arith.constant 0 : index
    %c0_6 = arith.constant 0 : index
    %6 = vector.load %arg4[%c0_5, %c0_6] : memref<64x128xf32, #tpu.memory_space<vmem>>, vector<64x128xf32>
    %cst_7 = arith.constant dense<0.000000e+00> : vector<32x128xf32>
    %7 = tpu.matmul %5, %6, %cst_7 {dimension_numbers = #tpu.dot_dimension_numbers<[1], [0], [0], [1], [0, 0, 1, 1], [], []>} : vector<32x64xf32>, vector<64x128xf32>, vector<32x128xf32> -> vector<32x128xf32>
    %c0_8 = arith.constant 0 : index
    %c0_9 = arith.constant 0 : index
    %8 = vector.load %arg5[%c0_8, %c0_9] : memref<1x128xf32, #tpu.memory_space<vmem>>, vector<1x128xf32>
    %9 = vector.broadcast %8 : vector<1x128xf32> to vector<32x128xf32>
    %10 = arith.addf %7, %9 : vector<32x128xf32>
    %cst_10 = arith.constant dense<0xFF800000> : vector<32xf32>
    %11 = vector.multi_reduction <maximumf>, %10, %cst_10 [1] : vector<32x128xf32> to vector<32xf32>
    %12 = vector.shape_cast %11 : vector<32xf32> to vector<32x1xf32>
    %13 = vector.broadcast %12 : vector<32x1xf32> to vector<32x128xf32>
    %14 = arith.subf %10, %13 : vector<32x128xf32>
    %15 = math.exp %14 : vector<32x128xf32>
    %cst_11 = arith.constant dense<0.000000e+00> : vector<32xf32>
    %16 = vector.multi_reduction <add>, %15, %cst_11 [1] : vector<32x128xf32> to vector<32xf32>
    %17 = vector.shape_cast %16 : vector<32xf32> to vector<32x1xf32>
    %18 = math.log %17 : vector<32x1xf32>
    %19 = vector.broadcast %18 : vector<32x1xf32> to vector<32x128xf32>
    %20 = arith.subf %14, %19 : vector<32x128xf32>
    %c0_12 = arith.constant 0 : index
    %c0_13 = arith.constant 0 : index
    %21 = vector.load %arg7[%c0_12, %c0_13] : memref<32x128xf32, #tpu.memory_space<vmem>>, vector<32x128xf32>
    tpu.vector_store %arg7[%c0_12, %c0_13], %20 {strides = array<i32>} : memref<32x128xf32, #tpu.memory_space<vmem>>, vector<32x128xf32>,
    %22 = tpu.iota {dimensions = array<i32: 1>} : vector<32x128xi32>
    %c0_14 = arith.constant 0 : index
    %c0_15 = arith.constant 0 : index
    %23 = vector.load %arg6[%c0_14, %c0_15] : memref<32x1xi32, #tpu.memory_space<vmem>>, vector<32x1xi32>
    %24 = vector.broadcast %23 : vector<32x1xi32> to vector<32x128xi32>
    %25 = arith.cmpi eq, %22, %24 : vector<32x128xi32>
    %cst_16 = arith.constant 0.000000e+00 : f32
    %26 = vector.broadcast %cst_16 : f32 to vector<32x128xf32>
    %27 = arith.select %25, %20, %26 : vector<32x128xi1>, vector<32x128xf32>
    %28 = vector.shape_cast %27 : vector<32x128xf32> to vector<1x32x128xf32>
    %cst_17 = arith.constant dense<0.000000e+00> : vector<1xf32>
    %29 = vector.multi_reduction <add>, %28, %cst_17 [1, 2] : vector<1x32x128xf32> to vector<1xf32>
    %30 = vector.shape_cast %29 : vector<1xf32> to vector<1x1x1xf32>
    %31 = vector.extract %30[0, 0, 0] : f32 from vector<1x1x1xf32>
    %32 = vector.broadcast %31 : f32 to vector<1x1xf32>
    %cst_18 = arith.constant 0.000000e+00 : f32
    %33 = vector.broadcast %cst_18 : f32 to vector<1x1xf32>
    %34 = arith.subf %33, %32 : vector<1x1xf32>
    %c0_19 = arith.constant 0 : index
    %c0_20 = arith.constant 0 : index
    %35 = vector.load %arg8[%c0_19, %c0_20] : memref<1x1xf32, #tpu.memory_space<vmem>>, vector<1x1xf32>
    tpu.vector_store %arg8[%c0_19, %c0_20], %34 {strides = array<i32>} : memref<1x1xf32, #tpu.memory_space<vmem>>, vector<1x1xf32>,
    return
  }
  func.func @transform_0(%arg0: i32) -> (i32, i32) {
    %c0_i32 = arith.constant 0 : i32
    %c0_i32_0 = arith.constant 0 : i32
    return %arg0, %c0_i32 : i32, i32
  }
  func.func @transform_1(%arg0: i32) -> (i32, i32) {
    %c0_i32 = arith.constant 0 : i32
    %c0_i32_0 = arith.constant 0 : i32
    %c0_i32_1 = arith.constant 0 : i32
    return %c0_i32, %c0_i32_0 : i32, i32
  }
  func.func @transform_2(%arg0: i32) -> (i32, i32) {
    %c0_i32 = arith.constant 0 : i32
    %c0_i32_0 = arith.constant 0 : i32
    %c0_i32_1 = arith.constant 0 : i32
    return %c0_i32, %c0_i32_0 : i32, i32
  }
  func.func @transform_3(%arg0: i32) -> (i32, i32) {
    %c0_i32 = arith.constant 0 : i32
    %c0_i32_0 = arith.constant 0 : i32
    %c0_i32_1 = arith.constant 0 : i32
    return %c0_i32, %c0_i32_0 : i32, i32
  }
  func.func @transform_4(%arg0: i32) -> (i32, i32) {
    %c0_i32 = arith.constant 0 : i32
    %c0_i32_0 = arith.constant 0 : i32
    %c0_i32_1 = arith.constant 0 : i32
    return %c0_i32, %c0_i32_0 : i32, i32
  }
  func.func @transform_5(%arg0: i32) -> (i32, i32) {
    %c0_i32 = arith.constant 0 : i32
    %c0_i32_0 = arith.constant 0 : i32
    return %arg0, %c0_i32 : i32, i32
  }
  func.func @transform_6(%arg0: i32) -> (i32, i32) {
    %c0_i32 = arith.constant 0 : i32
    %c0_i32_0 = arith.constant 0 : i32
    return %arg0, %c0_i32 : i32, i32
  }
  func.func @transform_7(%arg0: i32) -> (i32, i32) {
    %c0_i32 = arith.constant 0 : i32
    %c0_i32_0 = arith.constant 0 : i32
    return %arg0, %c0_i32 : i32, i32
  }
}

</mosaic_0001>

<llo_original>
// kernel: tpu_custom_call.1
$region0: #{tpu_custom_call.1}
  #allocation0 [shape = 'u32[]', space=smem, size = 0x4, offset = 0x4, fixed_abs, tag = 'smem constant byte address 0x4 - core index']
  #allocation1 [shape = 'u32[144,128]{1,0:T(1,128)}', space=vmem, size = 0x12000, scoped, tag = 'internal scratch']
  %s0 = inlined_call_operand.vmem [shape: f32[32,64], index: 0, kind: input, shape index: {}]
  %s1 = inlined_call_operand.hbm [shape: f32[64,64], index: 1, kind: input, shape index: {}]
  %s2 = inlined_call_operand.vmem [shape: f32[1,64], index: 2, kind: input, shape index: {}]
  %s3 = inlined_call_operand.hbm [shape: f32[64,128], index: 3, kind: input, shape index: {}]
  %s4 = inlined_call_operand.vmem [shape: f32[1,128], index: 4, kind: input, shape index: {}]
  %s5 = inlined_call_operand.vmem [shape: s32[32,1], index: 5, kind: input, shape index: {}]
  %s6 = inlined_call_operand.hbm [shape: f32[32,128], index: 6, kind: output, shape index: {0}]
  %s7 = inlined_call_operand.hbm [shape: f32[1,1], index: 7, kind: output, shape index: {1}]
  %8 = xla_tuple %s6, %s7
  %s9 = sld [smem:[#allocation0]]
  $region50: #{tpu_custom_call.1} parent=0
    _
  %s11 = ssub.s32 1, %s9
  %s12 = scalar_select 0, %s11, %s9
  $region1: #{tpu_custom_call.1} parent=0
    #allocation2 [shape = 'u8[32768]{0}', space=vmem, size = 0x8000, scoped, tag = 'input window, operand 1, single buffered']
    #allocation3 [shape = 's32[1]{0}', space=sflag, size = 0x4, scoped, tag = 'scoped memory for tpu_custom_call.1']
    #allocation4 [shape = 's32[1]{0}', space=sflag, size = 0x4, scoped, tag = 'scoped memory for tpu_custom_call.1']
    #allocation5 [shape = 'u8[32768]{0}', space=vmem, size = 0x8000, scoped, tag = 'input window, operand 3, single buffered']
    #allocation6 [shape = 's32[1]{0}', space=sflag, size = 0x4, scoped, tag = 'scoped memory for tpu_custom_call.1']
    #allocation7 [shape = 'u8[16384]{0}', space=vmem, size = 0x4000, scoped, tag = 'output window, operand 0, single buffered']
    #allocation8 [shape = 'u8[512]{0}', space=vmem, size = 0x400, scoped, tag = 'output window, operand 1, single buffered']
    #allocation9 [shape = 's32[1]{0}', space=sflag, size = 0x4, scoped, tag = 'scoped memory for tpu_custom_call.1']
    %13 = vsyncpa [#allocation3], 0
    %14 = vsyncpa [#allocation6], 0
    %15 = vsyncpa [#allocation4], 0
    %16 = vsyncpa [#allocation9], 0
    // Predicated region
    $region2: #{tpu_custom_call.1} parent=1 // pred_check
      _
    $region3: #{tpu_custom_call.1} parent=1 // pred_check_branch
      %18 = sbr.rel (0) target = $region5
    $region4: #{tpu_custom_call.1} parent=1 // pred_region
      _
    $region5: #{tpu_custom_call.1} parent=1 // pred_fallthru
      _
    // Predicated region
    $region6: #{tpu_custom_call.1} parent=1 // pred_check
      _
    $region7: #{tpu_custom_call.1} parent=1 // pred_check_branch
      %20 = sbr.rel (0) target = $region9
    $region8: #{tpu_custom_call.1} parent=1 // pred_region
      %s22 = ssub.s32 1024, 1024
      %23 = vsyncadd [#allocation3], %s22
      %s24 = sshll.u32 [#allocation2], 4
      %s25 = int_to_ptr.vmem [resolvable:$true] %s24
      %30 = dma.hbm_to_vmem [thread:$0]  %s1, 1024, %s25, [#allocation3], 128, 128, 8
    $region9: #{tpu_custom_call.1} parent=1 // pred_fallthru
      _
    // Predicated region
    $region10: #{tpu_custom_call.1} parent=1 // pred_check
      _
    $region11: #{tpu_custom_call.1} parent=1 // pred_check_branch
      %32 = sbr.rel (0) target = $region13
    $region12: #{tpu_custom_call.1} parent=1 // pred_region
      _
    $region13: #{tpu_custom_call.1} parent=1 // pred_fallthru
      _
    // Predicated region
    $region14: #{tpu_custom_call.1} parent=1 // pred_check
      _
    $region15: #{tpu_custom_call.1} parent=1 // pred_check_branch
      %34 = sbr.rel (0) target = $region17
    $region16: #{tpu_custom_call.1} parent=1 // pred_region
      %s36 = ssub.s32 1024, 1024
      %37 = vsyncadd [#allocation6], %s36
      %s38 = sshll.u32 [#allocation5], 4
      %s39 = int_to_ptr.vmem [resolvable:$true] %s38
      %44 = dma.hbm_to_vmem [thread:$0]  %s3, 1024, %s39, [#allocation6], 128, 128, 8
    $region17: #{tpu_custom_call.1} parent=1 // pred_fallthru
      _
    // Predicated region
    $region18: #{tpu_custom_call.1} parent=1 // pred_check
      _
    $region19: #{tpu_custom_call.1} parent=1 // pred_check_branch
      %46 = sbr.rel (0) target = $region21
    $region20: #{tpu_custom_call.1} parent=1 // pred_region
      _
    $region21: #{tpu_custom_call.1} parent=1 // pred_fallthru
      _
    // Predicated region
    $region22: #{tpu_custom_call.1} parent=1 // pred_check
      _
    $region23: #{tpu_custom_call.1} parent=1 // pred_check_branch
      %48 = sbr.rel (0) target = $region25
    $region24: #{tpu_custom_call.1} parent=1 // pred_region
      _
    $region25: #{tpu_custom_call.1} parent=1 // pred_fallthru
      _
    // Predicated region
    $region26: #{tpu_custom_call.1} parent=1 // pred_check
      _
    $region27: #{tpu_custom_call.1} parent=1 // pred_check_branch
      %50 = sbr.rel (0) target = $region29
    $region28: #{tpu_custom_call.1} parent=1 // pred_region
      %51 = dma.done [#allocation3], 1024
    $region29: #{tpu_custom_call.1} parent=1 // pred_fallthru
      _
    // Predicated region
    $region30: #{tpu_custom_call.1} parent=1 // pred_check
      _
    $region31: #{tpu_custom_call.1} parent=1 // pred_check_branch
      %53 = sbr.rel (0) target = $region33
    $region32: #{tpu_custom_call.1} parent=1 // pred_region
      %54 = dma.done [#allocation6], 1024
    $region33: #{tpu_custom_call.1} parent=1 // pred_fallthru
      _
    %v55 = vld [vmem:[%s0] sm:$0xff]
    %v56 = vld [vmem:[%s0 + $0x8] sm:$0xff]
    %v57 = vld [vmem:[%s0 + $0x10] sm:$0xff]
    %v58 = vld [vmem:[%s0 + $0x18] sm:$0xff]
    %v59 = vld [vmem:[#allocation2] sm:$0xff]
    %v60 = vld [vmem:[#allocation2 + $0x8] sm:$0xff]
    %v61 = vld [vmem:[#allocation2 + $0x10] sm:$0xff]
    %v62 = vld [vmem:[#allocation2 + $0x18] sm:$0xff]
    %v63 = vld [vmem:[#allocation2 + $0x20] sm:$0xff]
    %v64 = vld [vmem:[#allocation2 + $0x28] sm:$0xff]
    %v65 = vld [vmem:[#allocation2 + $0x30] sm:$0xff]
    %v66 = vld [vmem:[#allocation2 + $0x38] sm:$0xff]
    %v67 = vld [vmem:[%s2] sm:$0x1]
    %v69 = vlaneseq
    %v70 = vshrl.u32 %v69, 7
    %v71 = vsub.s32 0, %v70
    %v72 = vrot.slane %v67, %v71
    %vm74 = vcmask 523264
    %v76 = vsel %vm74, %v55, 0
    %v79 = vsel %vm74, %v56, 0
    %v82 = vsel %vm74, %v57, 0
    %v85 = vsel %vm74, %v58, 0
    %87 = vmatprep.subr.mxu0 0.0
    %88 = vmatpush1.msra.mxu0 %v59
    %89 = vmatprep.subr.mxu0 0.0
    %90 = vmatpush1.msra.mxu0 %v60
    %91 = vmatprep.subr.mxu0 0.0
    %92 = vmatpush1.msra.mxu0 %v61
    %93 = vmatprep.subr.mxu0 0.0
    %94 = vmatpush1.msra.mxu0 %v62
    %95 = vmatprep.subr.mxu0 0.0
    %96 = vmatpush1.msra.mxu0 %v63
    %97 = vmatprep.subr.mxu0 0.0
    %98 = vmatpush1.msra.mxu0 %v64
    %99 = vmatprep.subr.mxu0 0.0
    %100 = vmatpush1.msra.mxu0 %v65
    %101 = vmatprep.subr.mxu0 0.0
    %102 = vmatpush1.msra.mxu0 %v66
    %103 = vmatprep.subr.mxu0 0.0
    %104 = vmatpush1.msra.mxu0 0.0
    %105 = vmatprep.subr.mxu0 0.0
    %106 = vmatpush1.msra.mxu0 0.0
    %107 = vmatprep.subr.mxu0 0.0
    %108 = vmatpush1.msra.mxu0 0.0
    %109 = vmatprep.subr.mxu0 0.0
    %110 = vmatpush1.msra.mxu0 0.0
    %111 = vmatprep.subr.mxu0 0.0
    %112 = vmatpush1.msra.mxu0 0.0
    %113 = vmatprep.subr.mxu0 0.0
    %114 = vmatpush1.msra.mxu0 0.0
    %115 = vmatprep.subr.mxu0 0.0
    %116 = vmatpush1.msra.mxu0 0.0
    %117 = vmatprep.subr.mxu0 0.0
    %118 = vmatpush1.msra.mxu0 0.0
    %119 = vmatprep.subr.mxu0 0.0
    %120 = vmatpush1.msra.mxu0 0.0
    %121 = vmatprep.subr.mxu0 0.0
    %122 = vmatpush1.msra.mxu0 0.0
    %123 = vmatprep.subr.mxu0 0.0
    %124 = vmatpush1.msra.mxu0 0.0
    %125 = vmatprep.subr.mxu0 0.0
    %126 = vmatpush1.msra.mxu0 0.0
    %127 = vmatprep.subr.mxu0 0.0
    %128 = vmatpush1.msra.mxu0 0.0
    %129 = vmatprep.subr.mxu0 0.0
    %130 = vmatpush1.msra.mxu0 0.0
    %131 = vmatprep.subr.mxu0 0.0
    %132 = vmatpush1.msra.mxu0 0.0
    %133 = vmatprep.subr.mxu0 0.0
    %134 = vmatpush1.msra.mxu0 0.0
    %135 = vmatprep.subr.mxu0 0.0
    %136 = vmatpush1.msra.mxu0 0.0
    %137 = vmatprep.subr.mxu0 0.0
    %138 = vmatpush1.msra.mxu0 0.0
    %139 = vmatprep.subr.mxu0 0.0
    %140 = vmatpush1.msra.mxu0 0.0
    %141 = vmatprep.subr.mxu0 0.0
    %142 = vmatpush1.msra.mxu0 0.0
    %143 = vmatprep.subr.mxu0 0.0
    %144 = vmatpush1.msra.mxu0 0.0
    %145 = vmatprep.subr.mxu0 0.0
    %146 = vmatpush1.msra.mxu0 0.0
    %147 = vmatprep.subr.mxu0 0.0
    %148 = vmatpush1.msra.mxu0 0.0
    %149 = vmatprep.subr.mxu0 0.0
    %150 = vmatpush1.msra.mxu0 0.0
    %151 = vmatprep.mubr.f32.mxu0 0.0
    %152 = vmatmul.mubr.f32.gmra.mrb[0].mxu0 %v76
    %v153 = vpop.f32.mrb[0].mxu0
    %v154 = vadd.f32 %v72, %v153
    %v155 = vpop.f32.mrb[0].mxu0
    %156 = vmatprep.mubr.f32.mxu0 0.0
    %157 = vmatmul.mubr.f32.gmra.mrb[0].mxu0 %v79
    %v158 = vpop.f32.mrb[0].mxu0
    %v159 = vadd.f32 %v72, %v158
    %v160 = vpop.f32.mrb[0].mxu0
    %161 = vmatprep.mubr.f32.mxu0 0.0
    %162 = vmatmul.mubr.f32.gmra.mrb[0].mxu0 %v82
    %v163 = vpop.f32.mrb[0].mxu0
    %v164 = vadd.f32 %v72, %v163
    %v165 = vpop.f32.mrb[0].mxu0
    %166 = vmatprep.mubr.f32.mxu0 0.0
    %167 = vmatmul.mubr.f32.gmra.mrb[0].mxu0 %v85
    %v168 = vpop.f32.mrb[0].mxu0
    %v169 = vadd.f32 %v72, %v168
    %v170 = vpop.f32.mrb[0].mxu0
    %171 = vdwg.mxu0
    %v172 = vld [vmem:[#allocation5] sm:$0xff]
    %v173 = vld [vmem:[#allocation5 + $0x8] sm:$0xff]
    %v174 = vld [vmem:[#allocation5 + $0x10] sm:$0xff]
    %v175 = vld [vmem:[#allocation5 + $0x18] sm:$0xff]
    %v176 = vld [vmem:[#allocation5 + $0x20] sm:$0xff]
    %v177 = vld [vmem:[#allocation5 + $0x28] sm:$0xff]
    %v178 = vld [vmem:[#allocation5 + $0x30] sm:$0xff]
    %v179 = vld [vmem:[#allocation5 + $0x38] sm:$0xff]
    %v180 = vld [vmem:[%s4] sm:$0x1]
    %v182 = vlaneseq
    %v183 = vshrl.u32 %v182, 7
    %v184 = vsub.s32 0, %v183
    %v185 = vrot.slane %v180, %v184
    %v188 = vsel %vm74, %v154, 0
    %v191 = vsel %vm74, %v159, 0
    %v194 = vsel %vm74, %v164, 0
    %v197 = vsel %vm74, %v169, 0
    %199 = vmatprep.subr.mxu0 0.0
    %200 = vmatpush1.msra.mxu0 %v172
    %201 = vmatprep.subr.mxu0 0.0
    %202 = vmatpush1.msra.mxu0 %v173
    %203 = vmatprep.subr.mxu0 0.0
    %204 = vmatpush1.msra.mxu0 %v174
    %205 = vmatprep.subr.mxu0 0.0
    %206 = vmatpush1.msra.mxu0 %v175
    %207 = vmatprep.subr.mxu0 0.0
    %208 = vmatpush1.msra.mxu0 %v176
    %209 = vmatprep.subr.mxu0 0.0
    %210 = vmatpush1.msra.mxu0 %v177
    %211 = vmatprep.subr.mxu0 0.0
    %212 = vmatpush1.msra.mxu0 %v178
    %213 = vmatprep.subr.mxu0 0.0
    %214 = vmatpush1.msra.mxu0 %v179
    %215 = vmatprep.subr.mxu0 0.0
    %216 = vmatpush1.msra.mxu0 0.0
    %217 = vmatprep.subr.mxu0 0.0
    %218 = vmatpush1.msra.mxu0 0.0
    %219 = vmatprep.subr.mxu0 0.0
    %220 = vmatpush1.msra.mxu0 0.0
    %221 = vmatprep.subr.mxu0 0.0
    %222 = vmatpush1.msra.mxu0 0.0
    %223 = vmatprep.subr.mxu0 0.0
    %224 = vmatpush1.msra.mxu0 0.0
    %225 = vmatprep.subr.mxu0 0.0
    %226 = vmatpush1.msra.mxu0 0.0
    %227 = vmatprep.subr.mxu0 0.0
    %228 = vmatpush1.msra.mxu0 0.0
    %229 = vmatprep.subr.mxu0 0.0
    %230 = vmatpush1.msra.mxu0 0.0
    %231 = vmatprep.subr.mxu0 0.0
    %232 = vmatpush1.msra.mxu0 0.0
    %233 = vmatprep.subr.mxu0 0.0
    %234 = vmatpush1.msra.mxu0 0.0
    %235 = vmatprep.subr.mxu0 0.0
    %236 = vmatpush1.msra.mxu0 0.0
    %237 = vmatprep.subr.mxu0 0.0
    %238 = vmatpush1.msra.mxu0 0.0
    %239 = vmatprep.subr.mxu0 0.0
    %240 = vmatpush1.msra.mxu0 0.0
    %241 = vmatprep.subr.mxu0 0.0
    %242 = vmatpush1.msra.mxu0 0.0
    %243 = vmatprep.subr.mxu0 0.0
    %244 = vmatpush1.msra.mxu0 0.0
    %245 = vmatprep.subr.mxu0 0.0
    %246 = vmatpush1.msra.mxu0 0.0
    %247 = vmatprep.subr.mxu0 0.0
    %248 = vmatpush1.msra.mxu0 0.0
    %249 = vmatprep.subr.mxu0 0.0
    %250 = vmatpush1.msra.mxu0 0.0
    %251 = vmatprep.subr.mxu0 0.0
    %252 = vmatpush1.msra.mxu0 0.0
    %253 = vmatprep.subr.mxu0 0.0
    %254 = vmatpush1.msra.mxu0 0.0
    %255 = vmatprep.subr.mxu0 0.0
    %256 = vmatpush1.msra.mxu0 0.0
    %257 = vmatprep.subr.mxu0 0.0
    %258 = vmatpush1.msra.mxu0 0.0
    %259 = vmatprep.subr.mxu0 0.0
    %260 = vmatpush1.msra.mxu0 0.0
    %261 = vmatprep.subr.mxu0 0.0
    %262 = vmatpush1.msra.mxu0 0.0
    %263 = vmatprep.mubr.f32.mxu0 0.0
    %264 = vmatmul.mubr.f32.gmra.mrb[0].mxu0 %v188
    %v265 = vpop.f32.mrb[0].mxu0
    %v266 = vadd.f32 %v185, %v265
    %v267 = vpop.f32.mrb[0].mxu0
    %268 = vmatprep.mubr.f32.mxu0 0.0
    %269 = vmatmul.mubr.f32.gmra.mrb[0].mxu0 %v191
    %v270 = vpop.f32.mrb[0].mxu0
    %v271 = vadd.f32 %v185, %v270
    %v272 = vpop.f32.mrb[0].mxu0
    %273 = vmatprep.mubr.f32.mxu0 0.0
    %274 = vmatmul.mubr.f32.gmra.mrb[0].mxu0 %v194
    %v275 = vpop.f32.mrb[0].mxu0
    %v276 = vadd.f32 %v185, %v275
    %v277 = vpop.f32.mrb[0].mxu0
    %278 = vmatprep.mubr.f32.mxu0 0.0
    %279 = vmatmul.mubr.f32.gmra.mrb[0].mxu0 %v197
    %v280 = vpop.f32.mrb[0].mxu0
    %v281 = vadd.f32 %v185, %v280
    %v282 = vpop.f32.mrb[0].mxu0
    %283 = vdwg.mxu0
    %284 = vmax.xlane.f32.xlu0 %v266
    %v285 = vpop.xlane.xlu0 %284
    %286 = vmax.xlane.f32.xlu0 %v271
    %v287 = vpop.xlane.xlu0 %286
    %288 = vmax.xlane.f32.xlu0 %v276
    %v289 = vpop.xlane.xlu0 %288
    %290 = vmax.xlane.f32.xlu0 %v281
    %v291 = vpop.xlane.xlu0 %290
    %v292 = vsub.f32 %v266, %v285
    %v293 = vsub.f32 %v271, %v287
    %v294 = vsub.f32 %v276, %v289
    %v295 = vsub.f32 %v281, %v291
    %v296 = vmul.f32 %v292, 1.442695
    %v297 = vpow.pop %v296
    %v298 = vmul.f32 %v293, 1.442695
    %v299 = vpow.pop %v298
    %v300 = vmul.f32 %v294, 1.442695
    %v301 = vpow.pop %v300
    %v302 = vmul.f32 %v295, 1.442695
    %v303 = vpow.pop %v302
    %304 = vadd.xlane.f32.xlu0 %v297
    %v305 = vpop.xlane.xlu0 %304
    %306 = vadd.xlane.f32.xlu0 %v299
    %v307 = vpop.xlane.xlu0 %306
    %308 = vadd.xlane.f32.xlu0 %v301
    %v309 = vpop.xlane.xlu0 %308
    %310 = vadd.xlane.f32.xlu0 %v303
    %v311 = vpop.xlane.xlu0 %310
    %v312 = vlog2.pop %v305
    %v313 = vmul.f32 %v312, 0.6931472
    %v314 = vlog2.pop %v307
    %v315 = vmul.f32 %v314, 0.6931472
    %v316 = vlog2.pop %v309
    %v317 = vmul.f32 %v316, 0.6931472
    %v318 = vlog2.pop %v311
    %v319 = vmul.f32 %v318, 0.6931472
    %v320 = vsub.f32 %v292, %v313
    %v321 = vsub.f32 %v293, %v315
    %v322 = vsub.f32 %v294, %v317
    %v323 = vsub.f32 %v295, %v319
    %324 = vst [vmem:[#allocation7] sm:$0xff] %v320
    %325 = vst [vmem:[#allocation7 + $0x8] sm:$0xff] %v321
    %326 = vst [vmem:[#allocation7 + $0x10] sm:$0xff] %v322
    %327 = vst [vmem:[#allocation7 + $0x18] sm:$0xff] %v323
    %v328 = vlaneseq
    %v329 = vand.u32 %v328, 127
    %v330 = vld [vmem:[%s5] sm:$0xff]
    %v331 = vld [vmem:[%s5 + $0x8] sm:$0xff]
    %v332 = vld [vmem:[%s5 + $0x10] sm:$0xff]
    %v333 = vld [vmem:[%s5 + $0x18] sm:$0xff]
    %334 = vset.pattern.permute.xlu0 0
    %335 = vperm.xlu0 %334, %v330
    %v336 = vpop.permute.xlu0 %335
    %337 = vset.pattern.permute.xlu0 0
    %338 = vperm.xlu0 %337, %v331
    %v339 = vpop.permute.xlu0 %338
    %340 = vset.pattern.permute.xlu0 0
    %341 = vperm.xlu0 %340, %v332
    %v342 = vpop.permute.xlu0 %341
    %343 = vset.pattern.permute.xlu0 0
    %344 = vperm.xlu0 %343, %v333
    %v345 = vpop.permute.xlu0 %344
    %vm346 = vcmp.eq.s32.totalorder %v329, %v336
    %vm347 = vcmp.eq.s32.totalorder %v329, %v339
    %vm348 = vcmp.eq.s32.totalorder %v329, %v342
    %vm349 = vcmp.eq.s32.totalorder %v329, %v345
    %v350 = vsel %vm346, %v320, 0.0
    %v351 = vsel %vm347, %v321, 0.0
    %v352 = vsel %vm348, %v322, 0.0
    %v353 = vsel %vm349, %v323, 0.0
    %v354 = vadd.f32 %v350, %v351
    %v355 = vadd.f32 %v354, %v352
    %v356 = vadd.f32 %v355, %v353
    %357 = vadd.xlane.f32.xlu0 %v356
    %v358 = vpop.xlane.xlu0 %357
    %v359 = vrot.slane %v358, 4
    %v360 = vadd.f32 %v358, %v359
    %v361 = vrot.slane %v360, 2
    %v362 = vadd.f32 %v360, %v361
    %v363 = vrot.slane %v362, 1
    %v364 = vadd.f32 %v362, %v363
    %s365 = vtos %v364
    %v366 = vstv %s365
    %v367 = vsub.f32 0.0, %v366
    %vm368 = vcmask 0
    %369 = vst.msk [vmem:[#allocation8] sm:$0x1] %vm368, %v367
    // Predicated region
    $region34: #{tpu_custom_call.1} parent=1 // pred_check
      _
    $region35: #{tpu_custom_call.1} parent=1 // pred_check_branch
      %371 = sbr.rel (0) target = $region37
    $region36: #{tpu_custom_call.1} parent=1 // pred_region
      %s373 = ssub.s32 512, 512
      %374 = vsyncadd [#allocation4], %s373
      %s375 = sshll.u32 [#allocation7], 4
      %s376 = int_to_ptr.vmem [resolvable:$true] %s375
      %381 = dma.vmem_to_hbm [thread:$0]  %s376, 512, %s6, [#allocation4], 128, 128, 8
    $region37: #{tpu_custom_call.1} parent=1 // pred_fallthru
      _
    // Predicated region
    $region38: #{tpu_custom_call.1} parent=1 // pred_check
      _
    $region39: #{tpu_custom_call.1} parent=1 // pred_check_branch
      %383 = sbr.rel (0) target = $region41
    $region40: #{tpu_custom_call.1} parent=1 // pred_region
      %s385 = ssub.s32 16, 16
      %386 = vsyncadd [#allocation9], %s385
      %s388 = sshll.u32 [#allocation8], 4
      %s389 = int_to_ptr.vmem [resolvable:$true] %s388
      %391 = dma.vmem_to_hbm [thread:$0]  %s389, 16, %s7, [#allocation9]
    $region41: #{tpu_custom_call.1} parent=1 // pred_fallthru
      _
    // Predicated region
    $region42: #{tpu_custom_call.1} parent=1 // pred_check
      _
    $region43: #{tpu_custom_call.1} parent=1 // pred_check_branch
      %393 = sbr.rel (0) target = $region45
    $region44: #{tpu_custom_call.1} parent=1 // pred_region
      %394 = dma.done [#allocation4], 512
    $region45: #{tpu_custom_call.1} parent=1 // pred_fallthru
      _
    // Predicated region
    $region46: #{tpu_custom_call.1} parent=1 // pred_check
      _
    $region47: #{tpu_custom_call.1} parent=1 // pred_check_branch
      %396 = sbr.rel (0) target = $region49
    $region48: #{tpu_custom_call.1} parent=1 // pred_region
      %397 = dma.done [#allocation9], 16
    $region49: #{tpu_custom_call.1} parent=1 // pred_fallthru
      _
    %398 = vsyncpa [#allocation3], 1
    %399 = vsyncpa [#allocation6], 1
    %400 = vsyncpa [#allocation4], 1
    %401 = vsyncpa [#allocation9], 1

</llo_original>
